<compile_context>
chip_gen: v7x
topology: tpu7x:2x2x1
jax: 0.10.0
libtpu: 0.0.40
codegen_flags: <defaults>
</compile_context>

<pallas_src>
import math

import jax
import jax.numpy as jnp
from jax.experimental import pallas as pl
from jax.experimental.pallas import tpu as pltpu

HIDDEN = 128                                  # layers_standard_width
LEAKY_SLOPE = 0.01
RRELU_SLOPE = (1.0 / 8.0 + 1.0 / 3.0) / 2.0   # eval-mode rrelu
TARGET_TILE_B = 2048                          # rows per grid step


def _round_up(x, m):
    return (x + m - 1) // m * m


def _tensorcores_per_chip():
    # v7x exposes 2 TensorCores per chip to a single pallas_call; v5e/v6e have 1.
    try:
        kind = jax.devices()[0].device_kind.lower()
        if "v7" in kind:
            return 2
    except Exception:
        pass
    return 1


def dqn_kernel(x_ref,
               w_in_ref, b_in_ref,
               w_h0_ref, b_h0_ref,
               w_h1_ref, b_h1_ref,
               w_out_ref, b_out_ref,
               o_ref):
    # input layer (bf16 MXU inputs, f32 accumulate) + leaky_relu
    x = x_ref[...].astype(w_in_ref.dtype)
    h = jnp.dot(x, w_in_ref[...], preferred_element_type=jnp.float32) + b_in_ref[...]
    h = jnp.maximum(h, LEAKY_SLOPE * h)

    # inner[0] + rrelu (eval-mode fixed slope)
    h = jnp.dot(h.astype(w_h0_ref.dtype), w_h0_ref[...],
                preferred_element_type=jnp.float32) + b_h0_ref[...]
    h = jnp.maximum(h, RRELU_SLOPE * h)

    # inner[1] + relu
    h = jnp.dot(h.astype(w_h1_ref.dtype), w_h1_ref[...],
                preferred_element_type=jnp.float32) + b_h1_ref[...]
    h = jnp.maximum(h, 0.0)

    # output layer: compact width (n_actions rounded up to 8), no activation
    out = jnp.dot(h.astype(w_out_ref.dtype), w_out_ref[...],
                  preferred_element_type=jnp.float32) + b_out_ref[...]
    o_ref[...] = out.astype(o_ref.dtype)


def _choose_tiling(B, num_tc):
    tile_b = min(TARGET_TILE_B, _round_up(B, 8))
    b_pad = _round_up(B, tile_b)
    steps = b_pad // tile_b
    if num_tc > 1 and b_pad >= 1024:
        # Make the step count a multiple of the core count so both TCs get work.
        while steps % num_tc != 0 and tile_b > 512 and tile_b % 16 == 0:
            tile_b //= 2
            b_pad = _round_up(B, tile_b)
            steps = b_pad // tile_b
    return tile_b, b_pad, steps


def dqn_forward(x, params, *, use_bf16=True):
    (w_in, b_in, w_h0, b_h0, w_h1, b_h1, w_out, b_out) = params
    B, n_obs = x.shape
    n_actions = w_out.shape[1]
    n_pad = max(8, _round_up(n_actions, 8))       # compact, sublane-aligned width

    # Pad output weight/bias columns to n_pad (zeros).
    w_out_p = jnp.zeros((HIDDEN, n_pad), jnp.float32).at[:, :n_actions].set(w_out)
    b_out_p = jnp.zeros((1, n_pad), jnp.float32).at[:, :n_actions].set(b_out)

    # bf16 MXU inputs for all layers (f32 accumulation in-kernel).
    mm_dtype = jnp.bfloat16 if use_bf16 else jnp.float32
    w_in_c = w_in.astype(mm_dtype)
    w_h0_c = w_h0.astype(mm_dtype)
    w_h1_c = w_h1.astype(mm_dtype)
    w_out_c = w_out_p.astype(mm_dtype)

    num_tc = _tensorcores_per_chip()
    tile_b, b_pad, steps = _choose_tiling(B, num_tc)
    if b_pad != B:
        x = jnp.pad(x, ((0, b_pad - B), (0, 0)))

    core_par = getattr(pltpu, "CORE_PARALLEL", None)
    batch_sem = core_par if (num_tc > 1 and core_par is not None) else "parallel"

    const = lambda i: (0, 0)
    in_specs = [
        pl.BlockSpec((tile_b, n_obs), lambda i: (i, 0)),   # x: tiled over batch
        pl.BlockSpec((n_obs, HIDDEN), const),              # weights/biases: resident
        pl.BlockSpec((1, HIDDEN), const),
        pl.BlockSpec((HIDDEN, HIDDEN), const),
        pl.BlockSpec((1, HIDDEN), const),
        pl.BlockSpec((HIDDEN, HIDDEN), const),
        pl.BlockSpec((1, HIDDEN), const),
        pl.BlockSpec((HIDDEN, n_pad), const),
        pl.BlockSpec((1, n_pad), const),
    ]
    out_spec = pl.BlockSpec((tile_b, n_pad), lambda i: (i, 0))

    itemsize = 2 if use_bf16 else 4
    flops = 2 * b_pad * (n_obs * HIDDEN + 2 * HIDDEN * HIDDEN + HIDDEN * n_pad)
    weight_bytes = ((n_obs * HIDDEN + 2 * HIDDEN * HIDDEN + HIDDEN * n_pad) * itemsize
                    + (3 * HIDDEN + n_pad) * 4)
    bytes_accessed = b_pad * (n_obs + n_pad) * 4 + weight_bytes

    out_compact = pl.pallas_call(
        dqn_kernel,
        out_shape=jax.ShapeDtypeStruct((b_pad, n_pad), jnp.float32),
        grid=(steps,),
        in_specs=in_specs,
        out_specs=out_spec,
        compiler_params=pltpu.CompilerParams(
            dimension_semantics=(batch_sem,),
            vmem_limit_bytes=32 * 1024 * 1024),
        cost_estimate=pl.CostEstimate(flops=flops, transcendentals=0,
                                      bytes_accessed=bytes_accessed),
    )(x, w_in_c, b_in, w_h0_c, b_h0, w_h1_c, b_h1, w_out_c, b_out_p)

    return out_compact[:B, :n_actions]


def xavier_uniform(key, fan_in, fan_out):
    # torch.nn.init.xavier_uniform_: U(-a, a), a = sqrt(6 / (fan_in + fan_out))
    a = math.sqrt(6.0 / (fan_in + fan_out))
    # stored transposed (in, out); symmetric uniform => distribution-equivalent
    return jax.random.uniform(key, (fan_in, fan_out), jnp.float32, -a, a)


def init_params(key, n_observations, n_actions):
    k0, k1, k2, k3 = jax.random.split(key, 4)
    w_in = xavier_uniform(k0, n_observations, HIDDEN)
    b_in = jnp.full((1, HIDDEN), 0.01, jnp.float32)
    w_h0 = xavier_uniform(k1, HIDDEN, HIDDEN)
    b_h0 = jnp.full((1, HIDDEN), 0.01, jnp.float32)
    w_h1 = xavier_uniform(k2, HIDDEN, HIDDEN)
    b_h1 = jnp.full((1, HIDDEN), 0.01, jnp.float32)
    w_out = xavier_uniform(k3, HIDDEN, n_actions)
    b_out = jnp.full((1, n_actions), 0.01, jnp.float32)
    return (w_in, b_in, w_h0, b_h0, w_h1, b_h1, w_out, b_out)


def reference_forward(x, params, *, use_bf16=True):
    (w_in, b_in, w_h0, b_h0, w_h1, b_h1, w_out, b_out) = params
    mm = jnp.bfloat16 if use_bf16 else jnp.float32
    h = jnp.dot(x.astype(mm), w_in.astype(mm),
                preferred_element_type=jnp.float32) + b_in
    h = jnp.maximum(h, LEAKY_SLOPE * h)
    h = jnp.dot(h.astype(mm), w_h0.astype(mm),
                preferred_element_type=jnp.float32) + b_h0
    h = jnp.maximum(h, RRELU_SLOPE * h)
    h = jnp.dot(h.astype(mm), w_h1.astype(mm),
                preferred_element_type=jnp.float32) + b_h1
    h = jnp.maximum(h, 0.0)
    return jnp.dot(h.astype(mm), w_out.astype(mm),
                   preferred_element_type=jnp.float32) + b_out


if __name__ == "__main__":
    n_observations = 4
    n_actions = 2

    key = jax.random.PRNGKey(0)
    k_param, k_x1, k_x2 = jax.random.split(key, 3)
    params = init_params(k_param, n_observations, n_actions)

    # Small latency-path batch (single grid step, action selection).
    x_small = jax.random.normal(k_x1, (8, n_observations), jnp.float32)
    out_small = jax.block_until_ready(dqn_forward(x_small, params))
    assert out_small.shape == (8, n_actions)
    ref_small = reference_forward(x_small, params)            # same bf16 math
    assert jnp.allclose(out_small, ref_small, atol=1e-2, rtol=1e-2)
    ref_f32 = reference_forward(x_small, params, use_bf16=False)  # f32 sanity
    assert jnp.allclose(out_small, ref_f32, atol=5e-2, rtol=5e-2)

    # Larger (replay-buffer style) batch: exercises padding + a multi-step
    # pipelined grid with VMEM-resident weights (3000 -> 2 steps of 2048).
    x_big = jax.random.normal(k_x2, (3000, n_observations), jnp.float32)
    out_big = jax.block_until_ready(dqn_forward(x_big, params))
    assert out_big.shape == (3000, n_actions)
    ref_big = reference_forward(x_big, params)
    assert jnp.allclose(out_big, ref_big, atol=1e-2, rtol=1e-2)

    print("KERNEL_OK")
</pallas_src>

<mosaic_0001>
module attributes {stable_mosaic.version = 11 : i64} {
  func.func @dqn_kernel(%arg0: i32, %arg1: memref<8x4xf32, #tpu.memory_space<vmem>>, %arg2: memref<4x128xbf16, #tpu.memory_space<vmem>>, %arg3: memref<1x128xf32, #tpu.memory_space<vmem>>, %arg4: memref<128x128xbf16, #tpu.memory_space<vmem>>, %arg5: memref<1x128xf32, #tpu.memory_space<vmem>>, %arg6: memref<128x128xbf16, #tpu.memory_space<vmem>>, %arg7: memref<1x128xf32, #tpu.memory_space<vmem>>, %arg8: memref<128x8xbf16, #tpu.memory_space<vmem>>, %arg9: memref<1x8xf32, #tpu.memory_space<vmem>>, %arg10: memref<8x8xf32, #tpu.memory_space<vmem>>) attributes {dimension_semantics = [#tpu.dimension_semantics<parallel>], iteration_bounds = array<i64: 1>, scalar_prefetch = 0 : i64, scratch_operands = 0 : i64, tpu.core_type = #tpu.core_type<tc>, window_params = [{transform_indices = @transform_0, window_bounds = array<i64: 8, 4>}, {pipeline_mode = #tpu.pipeline_mode<synchronous>, transform_indices = @transform_1, window_bounds = array<i64: 4, 128>}, {pipeline_mode = #tpu.pipeline_mode<synchronous>, transform_indices = @transform_2, window_bounds = array<i64: 1, 128>}, {pipeline_mode = #tpu.pipeline_mode<synchronous>, transform_indices = @transform_3, window_bounds = array<i64: 128, 128>}, {pipeline_mode = #tpu.pipeline_mode<synchronous>, transform_indices = @transform_4, window_bounds = array<i64: 1, 128>}, {pipeline_mode = #tpu.pipeline_mode<synchronous>, transform_indices = @transform_5, window_bounds = array<i64: 128, 128>}, {pipeline_mode = #tpu.pipeline_mode<synchronous>, transform_indices = @transform_6, window_bounds = array<i64: 1, 128>}, {pipeline_mode = #tpu.pipeline_mode<synchronous>, transform_indices = @transform_7, window_bounds = array<i64: 128, 8>}, {pipeline_mode = #tpu.pipeline_mode<synchronous>, transform_indices = @transform_8, window_bounds = array<i64: 1, 8>}, {transform_indices = @transform_9, window_bounds = array<i64: 8, 8>}]} {
    %c0 = arith.constant 0 : index
    %c0_0 = arith.constant 0 : index
    %0 = vector.load %arg1[%c0, %c0_0] : memref<8x4xf32, #tpu.memory_space<vmem>>, vector<8x4xf32>
    %1 = arith.truncf %0 : vector<8x4xf32> to vector<8x4xbf16>
    %c0_1 = arith.constant 0 : index
    %c0_2 = arith.constant 0 : index
    %2 = vector.load %arg2[%c0_1, %c0_2] : memref<4x128xbf16, #tpu.memory_space<vmem>>, vector<4x128xbf16>
    %cst = arith.constant dense<0.000000e+00> : vector<8x128xf32>
    %3 = tpu.matmul %1, %2, %cst {dimension_numbers = #tpu.dot_dimension_numbers<[1], [0], [0], [1], [0, 0, 1, 1], [], []>} : vector<8x4xbf16>, vector<4x128xbf16>, vector<8x128xf32> -> vector<8x128xf32>
    %c0_3 = arith.constant 0 : index
    %c0_4 = arith.constant 0 : index
    %4 = vector.load %arg3[%c0_3, %c0_4] : memref<1x128xf32, #tpu.memory_space<vmem>>, vector<1x128xf32>
    %5 = vector.broadcast %4 : vector<1x128xf32> to vector<8x128xf32>
    %6 = arith.addf %3, %5 : vector<8x128xf32>
    %cst_5 = arith.constant 0.00999999977 : f32
    %7 = vector.broadcast %cst_5 : f32 to vector<8x128xf32>
    %8 = arith.mulf %7, %6 : vector<8x128xf32>
    %9 = arith.maximumf %6, %8 : vector<8x128xf32>
    %10 = arith.truncf %9 : vector<8x128xf32> to vector<8x128xbf16>
    %c0_6 = arith.constant 0 : index
    %c0_7 = arith.constant 0 : index
    %11 = vector.load %arg4[%c0_6, %c0_7] : memref<128x128xbf16, #tpu.memory_space<vmem>>, vector<128x128xbf16>
    %cst_8 = arith.constant dense<0.000000e+00> : vector<8x128xf32>
    %12 = tpu.matmul %10, %11, %cst_8 {dimension_numbers = #tpu.dot_dimension_numbers<[1], [0], [0], [1], [0, 0, 1, 1], [], []>} : vector<8x128xbf16>, vector<128x128xbf16>, vector<8x128xf32> -> vector<8x128xf32>
    %c0_9 = arith.constant 0 : index
    %c0_10 = arith.constant 0 : index
    %13 = vector.load %arg5[%c0_9, %c0_10] : memref<1x128xf32, #tpu.memory_space<vmem>>, vector<1x128xf32>
    %14 = vector.broadcast %13 : vector<1x128xf32> to vector<8x128xf32>
    %15 = arith.addf %12, %14 : vector<8x128xf32>
    %cst_11 = arith.constant 0.229166672 : f32
    %16 = vector.broadcast %cst_11 : f32 to vector<8x128xf32>
    %17 = arith.mulf %16, %15 : vector<8x128xf32>
    %18 = arith.maximumf %15, %17 : vector<8x128xf32>
    %19 = arith.truncf %18 : vector<8x128xf32> to vector<8x128xbf16>
    %c0_12 = arith.constant 0 : index
    %c0_13 = arith.constant 0 : index
    %20 = vector.load %arg6[%c0_12, %c0_13] : memref<128x128xbf16, #tpu.memory_space<vmem>>, vector<128x128xbf16>
    %cst_14 = arith.constant dense<0.000000e+00> : vector<8x128xf32>
    %21 = tpu.matmul %19, %20, %cst_14 {dimension_numbers = #tpu.dot_dimension_numbers<[1], [0], [0], [1], [0, 0, 1, 1], [], []>} : vector<8x128xbf16>, vector<128x128xbf16>, vector<8x128xf32> -> vector<8x128xf32>
    %c0_15 = arith.constant 0 : index
    %c0_16 = arith.constant 0 : index
    %22 = vector.load %arg7[%c0_15, %c0_16] : memref<1x128xf32, #tpu.memory_space<vmem>>, vector<1x128xf32>
    %23 = vector.broadcast %22 : vector<1x128xf32> to vector<8x128xf32>
    %24 = arith.addf %21, %23 : vector<8x128xf32>
    %cst_17 = arith.constant 0.000000e+00 : f32
    %25 = vector.broadcast %cst_17 : f32 to vector<8x128xf32>
    %26 = arith.maximumf %24, %25 : vector<8x128xf32>
    %27 = arith.truncf %26 : vector<8x128xf32> to vector<8x128xbf16>
    %c0_18 = arith.constant 0 : index
    %c0_19 = arith.constant 0 : index
    %28 = vector.load %arg8[%c0_18, %c0_19] : memref<128x8xbf16, #tpu.memory_space<vmem>>, vector<128x8xbf16>
    %cst_20 = arith.constant dense<0.000000e+00> : vector<8x8xf32>
    %29 = tpu.matmul %27, %28, %cst_20 {dimension_numbers = #tpu.dot_dimension_numbers<[1], [0], [0], [1], [0, 0, 1, 1], [], []>} : vector<8x128xbf16>, vector<128x8xbf16>, vector<8x8xf32> -> vector<8x8xf32>
    %c0_21 = arith.constant 0 : index
    %c0_22 = arith.constant 0 : index
    %30 = vector.load %arg9[%c0_21, %c0_22] : memref<1x8xf32, #tpu.memory_space<vmem>>, vector<1x8xf32>
    %31 = vector.broadcast %30 : vector<1x8xf32> to vector<8x8xf32>
    %32 = arith.addf %29, %31 : vector<8x8xf32>
    %c0_23 = arith.constant 0 : index
    %c0_24 = arith.constant 0 : index
    %33 = vector.load %arg10[%c0_23, %c0_24] : memref<8x8xf32, #tpu.memory_space<vmem>>, vector<8x8xf32>
    tpu.vector_store %arg10[%c0_23, %c0_24], %32 {strides = array<i32>} : memref<8x8xf32, #tpu.memory_space<vmem>>, vector<8x8xf32>,
    return
  }
  func.func @transform_0(%arg0: i32) -> (i32, i32) {
    %c0_i32 = arith.constant 0 : i32
    %c0_i32_0 = arith.constant 0 : i32
    return %arg0, %c0_i32 : i32, i32
  }
  func.func @transform_1(%arg0: i32) -> (i32, i32) {
    %c0_i32 = arith.constant 0 : i32
    %c0_i32_0 = arith.constant 0 : i32
    %c0_i32_1 = arith.constant 0 : i32
    return %c0_i32, %c0_i32_0 : i32, i32
  }
  func.func @transform_2(%arg0: i32) -> (i32, i32) {
    %c0_i32 = arith.constant 0 : i32
    %c0_i32_0 = arith.constant 0 : i32
    %c0_i32_1 = arith.constant 0 : i32
    return %c0_i32, %c0_i32_0 : i32, i32
  }
  func.func @transform_3(%arg0: i32) -> (i32, i32) {
    %c0_i32 = arith.constant 0 : i32
    %c0_i32_0 = arith.constant 0 : i32
    %c0_i32_1 = arith.constant 0 : i32
    return %c0_i32, %c0_i32_0 : i32, i32
  }
  func.func @transform_4(%arg0: i32) -> (i32, i32) {
    %c0_i32 = arith.constant 0 : i32
    %c0_i32_0 = arith.constant 0 : i32
    %c0_i32_1 = arith.constant 0 : i32
    return %c0_i32, %c0_i32_0 : i32, i32
  }
  func.func @transform_5(%arg0: i32) -> (i32, i32) {
    %c0_i32 = arith.constant 0 : i32
    %c0_i32_0 = arith.constant 0 : i32
    %c0_i32_1 = arith.constant 0 : i32
    return %c0_i32, %c0_i32_0 : i32, i32
  }
  func.func @transform_6(%arg0: i32) -> (i32, i32) {
    %c0_i32 = arith.constant 0 : i32
    %c0_i32_0 = arith.constant 0 : i32
    %c0_i32_1 = arith.constant 0 : i32
    return %c0_i32, %c0_i32_0 : i32, i32
  }
  func.func @transform_7(%arg0: i32) -> (i32, i32) {
    %c0_i32 = arith.constant 0 : i32
    %c0_i32_0 = arith.constant 0 : i32
    %c0_i32_1 = arith.constant 0 : i32
    return %c0_i32, %c0_i32_0 : i32, i32
  }
  func.func @transform_8(%arg0: i32) -> (i32, i32) {
    %c0_i32 = arith.constant 0 : i32
    %c0_i32_0 = arith.constant 0 : i32
    %c0_i32_1 = arith.constant 0 : i32
    return %c0_i32, %c0_i32_0 : i32, i32
  }
  func.func @transform_9(%arg0: i32) -> (i32, i32) {
    %c0_i32 = arith.constant 0 : i32
    %c0_i32_0 = arith.constant 0 : i32
    return %arg0, %c0_i32 : i32, i32
  }
}

</mosaic_0001>

<llo_original>
// kernel: tpu_custom_call.1
$region0: #{tpu_custom_call.1}
  #allocation0 [shape = 'u32[]', space=smem, size = 0x4, offset = 0x4, fixed_abs, tag = 'smem constant byte address 0x4 - core index']
  #allocation1 [shape = 'u32[144,128]{1,0:T(1,128)}', space=vmem, size = 0x12000, scoped, tag = 'internal scratch']
  %s0 = inlined_call_operand.vmem [shape: f32[8,4], index: 0, kind: input, shape index: {}]
  %s1 = inlined_call_operand.vmem [shape: bf16[4,128], index: 1, kind: input, shape index: {}]
  %s2 = inlined_call_operand.vmem [shape: f32[1,128], index: 2, kind: input, shape index: {}]
  %s3 = inlined_call_operand.vmem [shape: bf16[128,128], index: 3, kind: input, shape index: {}]
  %s4 = inlined_call_operand.vmem [shape: f32[1,128], index: 4, kind: input, shape index: {}]
  %s5 = inlined_call_operand.hbm [shape: bf16[128,128], index: 5, kind: input, shape index: {}]
  %s6 = inlined_call_operand.vmem [shape: f32[1,128], index: 6, kind: input, shape index: {}]
  %s7 = inlined_call_operand.vmem [shape: bf16[128,8], index: 7, kind: input, shape index: {}]
  %s8 = inlined_call_operand.vmem [shape: f32[1,8], index: 8, kind: input, shape index: {}]
  %s9 = inlined_call_operand.hbm [shape: f32[8,8], index: 9, kind: output, shape index: {}]
  %s10 = sld [smem:[#allocation0]]
  $region50: #{tpu_custom_call.1} parent=0
    _
  %s12 = ssub.s32 1, %s10
  %s13 = scalar_select 0, %s12, %s10
  $region1: #{tpu_custom_call.1} parent=0
    #allocation2 [shape = 'u8[32768]{0}', space=vmem, size = 0x8000, scoped, tag = 'input window, operand 5, single buffered']
    #allocation3 [shape = 's32[1]{0}', space=sflag, size = 0x4, scoped, tag = 'scoped memory for tpu_custom_call.1']
    #allocation4 [shape = 's32[1]{0}', space=sflag, size = 0x4, scoped, tag = 'scoped memory for tpu_custom_call.1']
    #allocation5 [shape = 'u8[4096]{0}', space=vmem, size = 0x1000, scoped, tag = 'output window, operand 0, single buffered']
    %14 = vsyncpa [#allocation3], 0
    %15 = vsyncpa [#allocation4], 0
    // Predicated region
    $region2: #{tpu_custom_call.1} parent=1 // pred_check
      _
    $region3: #{tpu_custom_call.1} parent=1 // pred_check_branch
      %17 = sbr.rel (0) target = $region5
    $region4: #{tpu_custom_call.1} parent=1 // pred_region
      _
    $region5: #{tpu_custom_call.1} parent=1 // pred_fallthru
      _
    // Predicated region
    $region6: #{tpu_custom_call.1} parent=1 // pred_check
      _
    $region7: #{tpu_custom_call.1} parent=1 // pred_check_branch
      %19 = sbr.rel (0) target = $region9
    $region8: #{tpu_custom_call.1} parent=1 // pred_region
      _
    $region9: #{tpu_custom_call.1} parent=1 // pred_fallthru
      _
    // Predicated region
    $region10: #{tpu_custom_call.1} parent=1 // pred_check
      _
    $region11: #{tpu_custom_call.1} parent=1 // pred_check_branch
      %21 = sbr.rel (0) target = $region13
    $region12: #{tpu_custom_call.1} parent=1 // pred_region
      _
    $region13: #{tpu_custom_call.1} parent=1 // pred_fallthru
      _
    // Predicated region
    $region14: #{tpu_custom_call.1} parent=1 // pred_check
      _
    $region15: #{tpu_custom_call.1} parent=1 // pred_check_branch
      %23 = sbr.rel (0) target = $region17
    $region16: #{tpu_custom_call.1} parent=1 // pred_region
      _
    $region17: #{tpu_custom_call.1} parent=1 // pred_fallthru
      _
    // Predicated region
    $region18: #{tpu_custom_call.1} parent=1 // pred_check
      _
    $region19: #{tpu_custom_call.1} parent=1 // pred_check_branch
      %25 = sbr.rel (0) target = $region21
    $region20: #{tpu_custom_call.1} parent=1 // pred_region
      _
    $region21: #{tpu_custom_call.1} parent=1 // pred_fallthru
      _
    // Predicated region
    $region22: #{tpu_custom_call.1} parent=1 // pred_check
      _
    $region23: #{tpu_custom_call.1} parent=1 // pred_check_branch
      %27 = sbr.rel (0) target = $region25
    $region24: #{tpu_custom_call.1} parent=1 // pred_region
      %s29 = ssub.s32 1024, 1024
      %30 = vsyncadd [#allocation3], %s29
      %s31 = sshll.u32 [#allocation2], 4
      %s32 = int_to_ptr.vmem [resolvable:$true] %s31
      %37 = dma.hbm_to_vmem [thread:$0]  %s5, 1024, %s32, [#allocation3], 64, 64, 4
    $region25: #{tpu_custom_call.1} parent=1 // pred_fallthru
      _
    // Predicated region
    $region26: #{tpu_custom_call.1} parent=1 // pred_check
      _
    $region27: #{tpu_custom_call.1} parent=1 // pred_check_branch
      %39 = sbr.rel (0) target = $region29
    $region28: #{tpu_custom_call.1} parent=1 // pred_region
      _
    $region29: #{tpu_custom_call.1} parent=1 // pred_fallthru
      _
    // Predicated region
    $region30: #{tpu_custom_call.1} parent=1 // pred_check
      _
    $region31: #{tpu_custom_call.1} parent=1 // pred_check_branch
      %41 = sbr.rel (0) target = $region33
    $region32: #{tpu_custom_call.1} parent=1 // pred_region
      _
    $region33: #{tpu_custom_call.1} parent=1 // pred_fallthru
      _
    // Predicated region
    $region34: #{tpu_custom_call.1} parent=1 // pred_check
      _
    $region35: #{tpu_custom_call.1} parent=1 // pred_check_branch
      %43 = sbr.rel (0) target = $region37
    $region36: #{tpu_custom_call.1} parent=1 // pred_region
      _
    $region37: #{tpu_custom_call.1} parent=1 // pred_fallthru
      _
    // Predicated region
    $region38: #{tpu_custom_call.1} parent=1 // pred_check
      _
    $region39: #{tpu_custom_call.1} parent=1 // pred_check_branch
      %45 = sbr.rel (0) target = $region41
    $region40: #{tpu_custom_call.1} parent=1 // pred_region
      %46 = dma.done [#allocation3], 1024
    $region41: #{tpu_custom_call.1} parent=1 // pred_fallthru
      _
    %v48 = vld [vmem:[%s0] sm:$0xff]
    %v49 = vpack.c.bf16 %v48, %v48
    %v50 = vld [vmem:[%s1] sm:$0x3]
    %v51 = vld [vmem:[%s2] sm:$0x1]
    %v53 = vlaneseq
    %v54 = vshrl.u32 %v53, 7
    %v55 = vsub.s32 0, %v54
    %v56 = vrot.slane %v51, %v55
    %vm58 = vcmask 31744
    %v60 = vsel %vm58, %v49, 0
    %vm62 = vcmask 1041408
    %v64 = vsel %vm62, %v50, 0
    %66 = vmatprep.subr.bf16.mxu0 0
    %67 = vmatpush1.bf16.msra.mxu0 %v64
    %68 = vmatprep.subr.bf16.mxu0 0
    %69 = vmatpush1.bf16.msra.mxu0 0
    %70 = vmatprep.subr.bf16.mxu0 0
    %71 = vmatpush1.bf16.msra.mxu0 0
    %72 = vmatprep.subr.bf16.mxu0 0
    %73 = vmatpush1.bf16.msra.mxu0 0
    %74 = vmatprep.subr.bf16.mxu0 0
    %75 = vmatpush1.bf16.msra.mxu0 0
    %76 = vmatprep.subr.bf16.mxu0 0
    %77 = vmatpush1.bf16.msra.mxu0 0
    %78 = vmatprep.subr.bf16.mxu0 0
    %79 = vmatpush1.bf16.msra.mxu0 0
    %80 = vmatprep.subr.bf16.mxu0 0
    %81 = vmatpush1.bf16.msra.mxu0 0
    %82 = vmatprep.subr.bf16.mxu0 0
    %83 = vmatpush1.bf16.msra.mxu0 0
    %84 = vmatprep.subr.bf16.mxu0 0
    %85 = vmatpush1.bf16.msra.mxu0 0
    %86 = vmatprep.subr.bf16.mxu0 0
    %87 = vmatpush1.bf16.msra.mxu0 0
    %88 = vmatprep.subr.bf16.mxu0 0
    %89 = vmatpush1.bf16.msra.mxu0 0
    %90 = vmatprep.subr.bf16.mxu0 0
    %91 = vmatpush1.bf16.msra.mxu0 0
    %92 = vmatprep.subr.bf16.mxu0 0
    %93 = vmatpush1.bf16.msra.mxu0 0
    %94 = vmatprep.subr.bf16.mxu0 0
    %95 = vmatpush1.bf16.msra.mxu0 0
    %96 = vmatprep.subr.bf16.mxu0 0
    %97 = vmatpush1.bf16.msra.mxu0 0
    %98 = vmatprep.mubr.bf16.mxu0 0
    %99 = vmatmul.mubr.bf16.gmra.mrb[0].mxu0 %v60
    %v100 = vpop.f32.mrb[0].mxu0
    %v101 = vadd.f32 %v56, %v100
    %v102 = vpop.f32.mrb[0].mxu0
    %v103 = vpop.f32.mrb[0].mxu0
    %v104 = vpop.f32.mrb[0].mxu0
    %105 = vdwg.mxu0
    %v106 = vmul.f32 %v101, 0.01
    %v107 = vmax.f32 %v101, %v106
    %v108 = vpack.c.bf16 %v107, %v107
    %v109 = vld [vmem:[%s3] sm:$0xf]
    %v110 = vld [vmem:[%s3 + $0x4] sm:$0xf]
    %v111 = vld [vmem:[%s3 + $0x8] sm:$0xf]
    %v112 = vld [vmem:[%s3 + $0xc] sm:$0xf]
    %v113 = vld [vmem:[%s3 + $0x10] sm:$0xf]
    %v114 = vld [vmem:[%s3 + $0x14] sm:$0xf]
    %v115 = vld [vmem:[%s3 + $0x18] sm:$0xf]
    %v116 = vld [vmem:[%s3 + $0x1c] sm:$0xf]
    %v117 = vld [vmem:[%s3 + $0x20] sm:$0xf]
    %v118 = vld [vmem:[%s3 + $0x24] sm:$0xf]
    %v119 = vld [vmem:[%s3 + $0x28] sm:$0xf]
    %v120 = vld [vmem:[%s3 + $0x2c] sm:$0xf]
    %v121 = vld [vmem:[%s3 + $0x30] sm:$0xf]
    %v122 = vld [vmem:[%s3 + $0x34] sm:$0xf]
    %v123 = vld [vmem:[%s3 + $0x38] sm:$0xf]
    %v124 = vld [vmem:[%s3 + $0x3c] sm:$0xf]
    %v125 = vld [vmem:[%s4] sm:$0x1]
    %v127 = vlaneseq
    %v128 = vshrl.u32 %v127, 7
    %v129 = vsub.s32 0, %v128
    %v130 = vrot.slane %v125, %v129
    %v148 = vunpack.c.l.b16 %v109
    %v149 = vunpack.c.l.b16 %v110
    %v150 = vunpack.c.l.b16 %v111
    %v151 = vunpack.c.l.b16 %v112
    %v152 = vunpack.c.l.b16 %v113
    %v153 = vunpack.c.l.b16 %v114
    %v154 = vunpack.c.l.b16 %v115
    %v155 = vunpack.c.l.b16 %v116
    %v156 = vunpack.c.l.b16 %v117
    %v157 = vunpack.c.l.b16 %v118
    %v158 = vunpack.c.l.b16 %v119
    %v159 = vunpack.c.l.b16 %v120
    %v160 = vunpack.c.l.b16 %v121
    %v161 = vunpack.c.l.b16 %v122
    %v162 = vunpack.c.l.b16 %v123
    %v163 = vunpack.c.l.b16 %v124
    %v164 = vpack.c.b16 %v149, %v148
    %v165 = vpack.c.b16 %v151, %v150
    %v166 = vpack.c.b16 %v153, %v152
    %v167 = vpack.c.b16 %v155, %v154
    %v168 = vpack.c.b16 %v157, %v156
    %v169 = vpack.c.b16 %v159, %v158
    %v170 = vpack.c.b16 %v161, %v160
    %v171 = vpack.c.b16 %v163, %v162
    %180 = vmatprep.subr.bf16.mxu0 0
    %181 = vmatpush1.bf16.msra.mxu0 %v164
    %182 = vmatprep.subr.bf16.mxu0 0
    %183 = vmatpush1.bf16.msra.mxu0 %v165
    %184 = vmatprep.subr.bf16.mxu0 0
    %185 = vmatpush1.bf16.msra.mxu0 %v166
    %186 = vmatprep.subr.bf16.mxu0 0
    %187 = vmatpush1.bf16.msra.mxu0 %v167
    %188 = vmatprep.subr.bf16.mxu0 0
    %189 = vmatpush1.bf16.msra.mxu0 %v168
    %190 = vmatprep.subr.bf16.mxu0 0
    %191 = vmatpush1.bf16.msra.mxu0 %v169
    %192 = vmatprep.subr.bf16.mxu0 0
    %193 = vmatpush1.bf16.msra.mxu0 %v170
    %194 = vmatprep.subr.bf16.mxu0 0
    %195 = vmatpush1.bf16.msra.mxu0 %v171
    %196 = vmatprep.subr.bf16.mxu0 0
    %197 = vmatpush1.bf16.msra.mxu0 0
    %198 = vmatprep.subr.bf16.mxu0 0
    %199 = vmatpush1.bf16.msra.mxu0 0
    %200 = vmatprep.subr.bf16.mxu0 0
    %201 = vmatpush1.bf16.msra.mxu0 0
    %202 = vmatprep.subr.bf16.mxu0 0
    %203 = vmatpush1.bf16.msra.mxu0 0
    %204 = vmatprep.subr.bf16.mxu0 0
    %205 = vmatpush1.bf16.msra.mxu0 0
    %206 = vmatprep.subr.bf16.mxu0 0
    %207 = vmatpush1.bf16.msra.mxu0 0
    %208 = vmatprep.subr.bf16.mxu0 0
    %209 = vmatpush1.bf16.msra.mxu0 0
    %210 = vmatprep.subr.bf16.mxu0 0
    %211 = vmatpush1.bf16.msra.mxu0 0
    %212 = vmatprep.mubr.bf16.mxu0 0
    %213 = vmatmul.mubr.bf16.gmra.mrb[0].mxu0 %v108
    %v214 = vpop.f32.mrb[0].mxu0
    %v215 = vadd.f32 %v130, %v214
    %v216 = vpop.f32.mrb[0].mxu0
    %v217 = vpop.f32.mrb[0].mxu0
    %v218 = vpop.f32.mrb[0].mxu0
    %219 = vdwg.mxu0
    %v220 = vmul.f32 %v215, 0.22916667
    %v221 = vmax.f32 %v215, %v220
    %v222 = vpack.c.bf16 %v221, %v221
    %v223 = vld [vmem:[#allocation2] sm:$0xf]
    %v224 = vld [vmem:[#allocation2 + $0x4] sm:$0xf]
    %v225 = vld [vmem:[#allocation2 + $0x8] sm:$0xf]
    %v226 = vld [vmem:[#allocation2 + $0xc] sm:$0xf]
    %v227 = vld [vmem:[#allocation2 + $0x10] sm:$0xf]
    %v228 = vld [vmem:[#allocation2 + $0x14] sm:$0xf]
    %v229 = vld [vmem:[#allocation2 + $0x18] sm:$0xf]
    %v230 = vld [vmem:[#allocation2 + $0x1c] sm:$0xf]
    %v231 = vld [vmem:[#allocation2 + $0x20] sm:$0xf]
    %v232 = vld [vmem:[#allocation2 + $0x24] sm:$0xf]
    %v233 = vld [vmem:[#allocation2 + $0x28] sm:$0xf]
    %v234 = vld [vmem:[#allocation2 + $0x2c] sm:$0xf]
    %v235 = vld [vmem:[#allocation2 + $0x30] sm:$0xf]
    %v236 = vld [vmem:[#allocation2 + $0x34] sm:$0xf]
    %v237 = vld [vmem:[#allocation2 + $0x38] sm:$0xf]
    %v238 = vld [vmem:[#allocation2 + $0x3c] sm:$0xf]
    %v239 = vld [vmem:[%s6] sm:$0x1]
    %v241 = vlaneseq
    %v242 = vshrl.u32 %v241, 7
    %v243 = vsub.s32 0, %v242
    %v244 = vrot.slane %v239, %v243
    %v262 = vunpack.c.l.b16 %v223
    %v263 = vunpack.c.l.b16 %v224
    %v264 = vunpack.c.l.b16 %v225
    %v265 = vunpack.c.l.b16 %v226
    %v266 = vunpack.c.l.b16 %v227
    %v267 = vunpack.c.l.b16 %v228
    %v268 = vunpack.c.l.b16 %v229
    %v269 = vunpack.c.l.b16 %v230
    %v270 = vunpack.c.l.b16 %v231
    %v271 = vunpack.c.l.b16 %v232
    %v272 = vunpack.c.l.b16 %v233
    %v273 = vunpack.c.l.b16 %v234
    %v274 = vunpack.c.l.b16 %v235
    %v275 = vunpack.c.l.b16 %v236
    %v276 = vunpack.c.l.b16 %v237
    %v277 = vunpack.c.l.b16 %v238
    %v278 = vpack.c.b16 %v263, %v262
    %v279 = vpack.c.b16 %v265, %v264
    %v280 = vpack.c.b16 %v267, %v266
    %v281 = vpack.c.b16 %v269, %v268
    %v282 = vpack.c.b16 %v271, %v270
    %v283 = vpack.c.b16 %v273, %v272
    %v284 = vpack.c.b16 %v275, %v274
    %v285 = vpack.c.b16 %v277, %v276
    %294 = vmatprep.subr.bf16.mxu0 0
    %295 = vmatpush1.bf16.msra.mxu0 %v278
    %296 = vmatprep.subr.bf16.mxu0 0
    %297 = vmatpush1.bf16.msra.mxu0 %v279
    %298 = vmatprep.subr.bf16.mxu0 0
    %299 = vmatpush1.bf16.msra.mxu0 %v280
    %300 = vmatprep.subr.bf16.mxu0 0
    %301 = vmatpush1.bf16.msra.mxu0 %v281
    %302 = vmatprep.subr.bf16.mxu0 0
    %303 = vmatpush1.bf16.msra.mxu0 %v282
    %304 = vmatprep.subr.bf16.mxu0 0
    %305 = vmatpush1.bf16.msra.mxu0 %v283
    %306 = vmatprep.subr.bf16.mxu0 0
    %307 = vmatpush1.bf16.msra.mxu0 %v284
    %308 = vmatprep.subr.bf16.mxu0 0
    %309 = vmatpush1.bf16.msra.mxu0 %v285
    %310 = vmatprep.subr.bf16.mxu0 0
    %311 = vmatpush1.bf16.msra.mxu0 0
    %312 = vmatprep.subr.bf16.mxu0 0
    %313 = vmatpush1.bf16.msra.mxu0 0
    %314 = vmatprep.subr.bf16.mxu0 0
    %315 = vmatpush1.bf16.msra.mxu0 0
    %316 = vmatprep.subr.bf16.mxu0 0
    %317 = vmatpush1.bf16.msra.mxu0 0
    %318 = vmatprep.subr.bf16.mxu0 0
    %319 = vmatpush1.bf16.msra.mxu0 0
    %320 = vmatprep.subr.bf16.mxu0 0
    %321 = vmatpush1.bf16.msra.mxu0 0
    %322 = vmatprep.subr.bf16.mxu0 0
    %323 = vmatpush1.bf16.msra.mxu0 0
    %324 = vmatprep.subr.bf16.mxu0 0
    %325 = vmatpush1.bf16.msra.mxu0 0
    %326 = vmatprep.mubr.bf16.mxu0 0
    %327 = vmatmul.mubr.bf16.gmra.mrb[0].mxu0 %v222
    %v328 = vpop.f32.mrb[0].mxu0
    %v329 = vadd.f32 %v244, %v328
    %v330 = vpop.f32.mrb[0].mxu0
    %v331 = vpop.f32.mrb[0].mxu0
    %v332 = vpop.f32.mrb[0].mxu0
    %333 = vdwg.mxu0
    %v334 = vmax.f32 %v329, 0.0
    %v335 = vpack.c.bf16 %v334, %v334
    %v336 = vld [vmem:[%s7] sm:$0xf]
    %v337 = vld [vmem:[%s7 + $0x4] sm:$0xf]
    %v338 = vld [vmem:[%s7 + $0x8] sm:$0xf]
    %v339 = vld [vmem:[%s7 + $0xc] sm:$0xf]
    %v340 = vld [vmem:[%s7 + $0x10] sm:$0xf]
    %v341 = vld [vmem:[%s7 + $0x14] sm:$0xf]
    %v342 = vld [vmem:[%s7 + $0x18] sm:$0xf]
    %v343 = vld [vmem:[%s7 + $0x1c] sm:$0xf]
    %v344 = vld [vmem:[%s7 + $0x20] sm:$0xf]
    %v345 = vld [vmem:[%s7 + $0x24] sm:$0xf]
    %v346 = vld [vmem:[%s7 + $0x28] sm:$0xf]
    %v347 = vld [vmem:[%s7 + $0x2c] sm:$0xf]
    %v348 = vld [vmem:[%s7 + $0x30] sm:$0xf]
    %v349 = vld [vmem:[%s7 + $0x34] sm:$0xf]
    %v350 = vld [vmem:[%s7 + $0x38] sm:$0xf]
    %v351 = vld [vmem:[%s7 + $0x3c] sm:$0xf]
    %v352 = vld [vmem:[%s8] sm:$0x1]
    %v354 = vlaneseq
    %v355 = vshrl.u32 %v354, 7
    %v356 = vsub.s32 0, %v355
    %v357 = vrot.slane %v352, %v356
    %v375 = vunpack.c.l.b16 %v336
    %v376 = vunpack.c.l.b16 %v337
    %v377 = vunpack.c.l.b16 %v338
    %v378 = vunpack.c.l.b16 %v339
    %v379 = vunpack.c.l.b16 %v340
    %v380 = vunpack.c.l.b16 %v341
    %v381 = vunpack.c.l.b16 %v342
    %v382 = vunpack.c.l.b16 %v343
    %v383 = vunpack.c.l.b16 %v344
    %v384 = vunpack.c.l.b16 %v345
    %v385 = vunpack.c.l.b16 %v346
    %v386 = vunpack.c.l.b16 %v347
    %v387 = vunpack.c.l.b16 %v348
    %v388 = vunpack.c.l.b16 %v349
    %v389 = vunpack.c.l.b16 %v350
    %v390 = vunpack.c.l.b16 %v351
    %v391 = vpack.c.b16 %v376, %v375
    %v392 = vpack.c.b16 %v378, %v377
    %v393 = vpack.c.b16 %v380, %v379
    %v394 = vpack.c.b16 %v382, %v381
    %v395 = vpack.c.b16 %v384, %v383
    %v396 = vpack.c.b16 %v386, %v385
    %v397 = vpack.c.b16 %v388, %v387
    %v398 = vpack.c.b16 %v390, %v389
    %407 = vmatprep.subr.bf16.mxu0 0
    %408 = vmatpush1.bf16.msra.mxu0 %v391
    %409 = vmatprep.subr.bf16.mxu0 0
    %410 = vmatpush1.bf16.msra.mxu0 %v392
    %411 = vmatprep.subr.bf16.mxu0 0
    %412 = vmatpush1.bf16.msra.mxu0 %v393
    %413 = vmatprep.subr.bf16.mxu0 0
    %414 = vmatpush1.bf16.msra.mxu0 %v394
    %415 = vmatprep.subr.bf16.mxu0 0
    %416 = vmatpush1.bf16.msra.mxu0 %v395
    %417 = vmatprep.subr.bf16.mxu0 0
    %418 = vmatpush1.bf16.msra.mxu0 %v396
    %419 = vmatprep.subr.bf16.mxu0 0
    %420 = vmatpush1.bf16.msra.mxu0 %v397
    %421 = vmatprep.subr.bf16.mxu0 0
    %422 = vmatpush1.bf16.msra.mxu0 %v398
    %423 = vmatprep.subr.bf16.mxu0 0
    %424 = vmatpush1.bf16.msra.mxu0 0
    %425 = vmatprep.subr.bf16.mxu0 0
    %426 = vmatpush1.bf16.msra.mxu0 0
    %427 = vmatprep.subr.bf16.mxu0 0
    %428 = vmatpush1.bf16.msra.mxu0 0
    %429 = vmatprep.subr.bf16.mxu0 0
    %430 = vmatpush1.bf16.msra.mxu0 0
    %431 = vmatprep.subr.bf16.mxu0 0
    %432 = vmatpush1.bf16.msra.mxu0 0
    %433 = vmatprep.subr.bf16.mxu0 0
    %434 = vmatpush1.bf16.msra.mxu0 0
    %435 = vmatprep.subr.bf16.mxu0 0
    %436 = vmatpush1.bf16.msra.mxu0 0
    %437 = vmatprep.subr.bf16.mxu0 0
    %438 = vmatpush1.bf16.msra.mxu0 0
    %439 = vmatprep.mubr.bf16.mxu0 0
    %440 = vmatmul.mubr.bf16.gmra.mrb[0].mxu0 %v335
    %v441 = vpop.f32.mrb[0].mxu0
    %v442 = vadd.f32 %v357, %v441
    %v443 = vpop.f32.mrb[0].mxu0
    %v444 = vpop.f32.mrb[0].mxu0
    %v445 = vpop.f32.mrb[0].mxu0
    %446 = vdwg.mxu0
    %vm447 = vcmask 64512
    %448 = vst.msk [vmem:[#allocation5] sm:$0xff] %vm447, %v442
    // Predicated region
    $region42: #{tpu_custom_call.1} parent=1 // pred_check
      _
    $region43: #{tpu_custom_call.1} parent=1 // pred_check_branch
      %450 = sbr.rel (0) target = $region45
    $region44: #{tpu_custom_call.1} parent=1 // pred_region
      %s452 = ssub.s32 128, 128
      %453 = vsyncadd [#allocation4], %s452
      %s455 = sshll.u32 [#allocation5], 4
      %s456 = int_to_ptr.vmem [resolvable:$true] %s455
      %458 = dma.vmem_to_hbm [thread:$0]  %s456, 128, %s9, [#allocation4]
    $region45: #{tpu_custom_call.1} parent=1 // pred_fallthru
      _
    // Predicated region
    $region46: #{tpu_custom_call.1} parent=1 // pred_check
      _
    $region47: #{tpu_custom_call.1} parent=1 // pred_check_branch
      %460 = sbr.rel (0) target = $region49
    $region48: #{tpu_custom_call.1} parent=1 // pred_region
      %461 = dma.done [#allocation4], 128
    $region49: #{tpu_custom_call.1} parent=1 // pred_fallthru
      _
    %462 = vsyncpa [#allocation3], 1
    %463 = vsyncpa [#allocation4], 1

</llo_original>
